<compile_context>
chip_gen: v7x
topology: tpu7x:2x2x1
jax: 0.10.0
libtpu: 0.0.40
codegen_flags: <defaults>
</compile_context>

<pallas_src>
import functools

import jax
import jax.numpy as jnp
from jax import lax
from jax.experimental import pallas as pl
from jax.experimental.pallas import tpu as pltpu

_LANE = 128
_TARGET_BLOCK_BYTES = 2 * 1024 * 1024   # ~2 MiB per input block (per review)


def _num_tensorcores():
    """Best-effort trace-time query of TensorCores per chip (v7x == 2)."""
    get_info = getattr(pltpu, "get_tpu_info", None)
    if get_info is None:
        return 1
    try:
        info = get_info()
    except Exception:
        return 1
    for name in ("num_cores", "num_tensorcores", "tensorcore_count",
                 "num_cores_per_chip", "core_count"):
        val = getattr(info, name, None)
        if isinstance(val, int) and val > 0:
            return val
    return 1


def _rmse_kernel(t_ref, p_ref, o_ref, *, tile, steps, num_tiles,
                 last_tile_rows, has_duplicate):
    c = pl.program_id(0)   # TensorCore / parallel axis
    j = pl.program_id(1)   # reduction steps handled by this core

    @pl.when(j == 0)
    def _():
        o_ref[...] = jnp.zeros_like(o_ref)

    def accumulate(nrows):
        """Add sum((t - p)^2) over the first `nrows` rows of this tile.

        `nrows` is a static Python int, so full tiles take a pure 3-op VPU
        path (no masks) and the ragged last tile just loops fewer chunks.
        """
        chunks, rem = divmod(nrows, 8)
        acc = jnp.zeros((8, _LANE), jnp.float32)
        if chunks > 0:
            def body(i, a):
                r0 = pl.multiple_of(i * 8, 8)
                dt = (t_ref[pl.ds(r0, 8), :].astype(jnp.float32)
                      - p_ref[pl.ds(r0, 8), :].astype(jnp.float32))
                return a + dt * dt
            acc = lax.fori_loop(0, chunks, body, acc, unroll=min(8, chunks))
        if rem > 0:
            # Only hit for tiny inputs where the whole array is one block and
            # rows % 8 != 0; fold the leftover (<8) rows into sublane 0.
            dt = (t_ref[pl.ds(chunks * 8, rem), :].astype(jnp.float32)
                  - p_ref[pl.ds(chunks * 8, rem), :].astype(jnp.float32))
            lane = jnp.sum(dt * dt, axis=0, keepdims=True)           # (1,128)
            sub0 = jax.lax.broadcasted_iota(jnp.int32, (8, _LANE), 0) == 0
            acc = acc + jnp.where(sub0, lane, 0.0)
        o_ref[...] += acc

    ragged = last_tile_rows != tile
    if not ragged and not has_duplicate:
        # Hot path: every grid step is a full tile, no branching at all.
        accumulate(tile)
    else:
        tile_idx = c * steps + j
        last = num_tiles - 1
        full_pred = (tile_idx < last) if ragged else (tile_idx <= last)

        @pl.when(full_pred)
        def _():
            accumulate(tile)

        if ragged:
            @pl.when(tile_idx == last)
            def _():
                accumulate(last_tile_rows)
        # tile_idx > last: clamped duplicate tile on the second core -- skip.


def rmse_loss(truth, predict, *, tile_rows=None, num_cores=None):
    """RMSE = sqrt(mean((truth - predict)**2)) over all elements."""
    assert truth.shape == predict.shape, "inputs must have matching shapes"
    n = truth.size
    t = truth.reshape(-1)
    p = predict.reshape(-1)

    # Tail of < 128 elements (n % 128): tiny pure-JAX sum.
    n_main = (n // _LANE) * _LANE
    tail_sum = jnp.float32(0.0)
    if n_main < n:
        dt = t[n_main:].astype(jnp.float32) - p[n_main:].astype(jnp.float32)
        tail_sum = jnp.sum(dt * dt)
        # TODO(synk): this prefix slice makes one extra HBM copy when
        # n % 128 != 0; a zero-copy ragged path needs a manual-DMA kernel.
        t = t[:n_main]
        p = p[:n_main]
    if n_main == 0:
        return jnp.sqrt(tail_sum / n)

    rows = n_main // _LANE
    t2 = t.reshape(rows, _LANE)   # free lane-dense view, native dtype
    p2 = p.reshape(rows, _LANE)

    # dtype-adaptive tile: ~2 MiB per input block (4096 rows f32, 8192 bf16),
    # a multiple of 8 rows. 2 inputs x 2 buffers x 2 MiB = 8 MiB total, inside
    # the default scoped VMEM on v5e (16 MiB) and v6e/v7x (32 MiB).
    if tile_rows is None:
        itemsize = max(jnp.dtype(truth.dtype).itemsize,
                       jnp.dtype(predict.dtype).itemsize)
        tile_rows = max(8, (_TARGET_BLOCK_BYTES // (_LANE * itemsize)) // 8 * 8)
    tile = tile_rows if rows > tile_rows else rows
    num_tiles = pl.cdiv(rows, tile)

    # Split the reduction over the leading "parallel" axis only when the chip
    # actually has >1 TensorCore (v7x); on v5e/v6e the split is just a serial
    # loop that can force a wasted duplicate-tile DMA when num_tiles is odd.
    if num_cores is None:
        num_cores = _num_tensorcores()
    num_cores = max(1, min(num_cores, num_tiles))
    steps = pl.cdiv(num_tiles, num_cores)
    has_duplicate = num_cores * steps > num_tiles
    last_tile_rows = rows - (num_tiles - 1) * tile

    def in_map(c, j):
        # Clamp so the DMA never walks off the array; the clamped duplicate
        # tile contributes nothing (its compute is skipped in-kernel).
        return (jnp.minimum(c * steps + j, num_tiles - 1), 0)

    bytes_accessed = (n_main * (truth.dtype.itemsize + predict.dtype.itemsize)
                      + num_cores * 8 * _LANE * 4)

    partials = pl.pallas_call(
        functools.partial(_rmse_kernel, tile=tile, steps=steps,
                          num_tiles=num_tiles, last_tile_rows=last_tile_rows,
                          has_duplicate=has_duplicate),
        out_shape=jax.ShapeDtypeStruct((num_cores, 8, _LANE), jnp.float32),
        grid_spec=pltpu.PrefetchScalarGridSpec(
            num_scalar_prefetch=0,
            grid=(num_cores, steps),
            in_specs=[
                pl.BlockSpec((tile, _LANE), in_map),
                pl.BlockSpec((tile, _LANE), in_map),
            ],
            out_specs=pl.BlockSpec((None, 8, _LANE), lambda c, j: (c, 0, 0)),
        ),
        compiler_params=pltpu.CompilerParams(
            dimension_semantics=("parallel", "arbitrary"),
        ),
        cost_estimate=pl.CostEstimate(
            flops=3 * n, transcendentals=0, bytes_accessed=bytes_accessed),
    )(t2, p2)

    total = jnp.sum(partials) + tail_sum
    return jnp.sqrt(total / n)


if __name__ == "__main__":
    key = jax.random.PRNGKey(0)
    k1, k2 = jax.random.split(key)

    def ref_rmse(a, b):
        d = a.astype(jnp.float32) - b.astype(jnp.float32)
        return jnp.sqrt(jnp.mean(d * d))

    # 1) Small NCHW-style shapes, as the PyTorch caller would pass.
    t1 = jax.random.normal(k1, (2, 4, 16, 16), dtype=jnp.float32)
    p1 = jax.random.normal(k2, (2, 4, 16, 16), dtype=jnp.float32)
    r1 = rmse_loss(t1, p1)
    jax.block_until_ready(r1)
    assert jnp.allclose(r1, ref_rmse(t1, p1), rtol=1e-5, atol=1e-6), r1

    # 2) Ragged: element count not a multiple of 128 (JAX tail + non-8 rows).
    t2 = jax.random.normal(k1, (4, 3, 33, 37), dtype=jnp.float32)
    p2 = jax.random.normal(k2, (4, 3, 33, 37), dtype=jnp.float32)
    r2 = rmse_loss(t2, p2)
    jax.block_until_ready(r2)
    assert jnp.allclose(r2, ref_rmse(t2, p2), rtol=1e-5, atol=1e-6), r2

    # 3) Multi-tile, even 2-way core split (forced small tiles for coverage).
    t3 = jax.random.normal(k1, (8, 8, 64, 64), dtype=jnp.float32)
    p3 = jax.random.normal(k2, (8, 8, 64, 64), dtype=jnp.float32)
    r3 = rmse_loss(t3, p3, tile_rows=256, num_cores=2)
    jax.block_until_ready(r3)
    assert jnp.allclose(r3, ref_rmse(t3, p3), rtol=2e-5, atol=1e-6), r3

    # 4) Ragged last tile + clamped duplicate tile on the second core.
    t4 = jax.random.normal(k1, (1000, 128), dtype=jnp.float32)
    p4 = jax.random.normal(k2, (1000, 128), dtype=jnp.float32)
    r4 = rmse_loss(t4, p4, tile_rows=384, num_cores=2)
    jax.block_until_ready(r4)
    assert jnp.allclose(r4, ref_rmse(t4, p4), rtol=2e-5, atol=1e-6), r4

    # 5) Auto config: full-size (4096-row) tile plus a ragged last tile.
    t5 = jax.random.normal(k1, (4200, 128), dtype=jnp.float32)
    p5 = jax.random.normal(k2, (4200, 128), dtype=jnp.float32)
    r5 = rmse_loss(t5, p5)
    jax.block_until_ready(r5)
    assert jnp.allclose(r5, ref_rmse(t5, p5), rtol=2e-5, atol=1e-6), r5

    # 6) bf16 inputs (cast to f32 inside the kernel, hidden under the DMA).
    t6 = jax.random.normal(k1, (2, 4, 16, 16), dtype=jnp.bfloat16)
    p6 = jax.random.normal(k2, (2, 4, 16, 16), dtype=jnp.bfloat16)
    r6 = rmse_loss(t6, p6)
    jax.block_until_ready(r6)
    assert jnp.allclose(r6, ref_rmse(t6, p6), rtol=1e-5, atol=1e-6), r6

    print("KERNEL_OK")
</pallas_src>

<mosaic_0001>
module attributes {stable_mosaic.version = 11 : i64} {
  func.func @_rmse_kernel(%arg0: i32, %arg1: i32, %arg2: memref<16x128xf32, #tpu.memory_space<vmem>>, %arg3: memref<16x128xf32, #tpu.memory_space<vmem>>, %arg4: memref<1x8x128xf32, #tpu.memory_space<vmem>>) attributes {dimension_semantics = [#tpu.dimension_semantics<parallel>, #tpu.dimension_semantics<arbitrary>], iteration_bounds = array<i64: 1, 1>, scalar_prefetch = 0 : i64, scratch_operands = 0 : i64, tpu.core_type = #tpu.core_type<tc>, window_params = [{transform_indices = @transform_0, window_bounds = array<i64: 16, 128>}, {transform_indices = @transform_1, window_bounds = array<i64: 16, 128>}, {transform_indices = @transform_2, window_bounds = array<i64: 1, 8, 128>}]} {
    %c0_i32 = arith.constant 0 : i32
    %0 = arith.cmpi eq, %arg1, %c0_i32 : i32
    %1 = arith.extui %0 : i1 to i32
    %c0_i32_0 = arith.constant 0 : i32
    %2 = arith.cmpi ne, %1, %c0_i32_0 : i32
    scf.if %2 {
      %cst_12 = arith.constant 0.000000e+00 : f32
      %28 = vector.broadcast %cst_12 : f32 to vector<8x128xf32>
      %c0_13 = arith.constant 0 : index
      %c0_14 = arith.constant 0 : index
      %c0_15 = arith.constant 0 : index
      %29 = vector.load %arg4[%c0_13, %c0_14, %c0_15] : memref<1x8x128xf32, #tpu.memory_space<vmem>>, vector<1x8x128xf32>
      %30 = vector.shape_cast %29 : vector<1x8x128xf32> to vector<8x128xf32>
      %31 = vector.shape_cast %28 : vector<8x128xf32> to vector<1x8x128xf32>
      tpu.vector_store %arg4[%c0_13, %c0_14, %c0_15], %31 {strides = array<i32>} : memref<1x8x128xf32, #tpu.memory_space<vmem>>, vector<1x8x128xf32>,
    } else {
    }
    %cst = arith.constant 0.000000e+00 : f32
    %3 = vector.broadcast %cst : f32 to vector<8x128xf32>
    %c0_i32_1 = arith.constant 0 : i32
    %c8_i32 = arith.constant 8 : i32
    %4 = arith.muli %c0_i32_1, %c8_i32 : i32
    %5 = tpu.assume_multiple %4, 8 : i32
    %6 = arith.index_cast %5 : i32 to index
    %c0 = arith.constant 0 : index
    %7 = vector.load %arg2[%6, %c0] : memref<16x128xf32, #tpu.memory_space<vmem>>, vector<8x128xf32>
    %8 = arith.index_cast %5 : i32 to index
    %c0_2 = arith.constant 0 : index
    %9 = vector.load %arg3[%8, %c0_2] : memref<16x128xf32, #tpu.memory_space<vmem>>, vector<8x128xf32>
    %10 = arith.subf %7, %9 : vector<8x128xf32>
    %11 = arith.mulf %10, %10 : vector<8x128xf32>
    %12 = arith.addf %3, %11 : vector<8x128xf32>
    %c1_i32 = arith.constant 1 : i32
    %c8_i32_3 = arith.constant 8 : i32
    %13 = arith.muli %c1_i32, %c8_i32_3 : i32
    %14 = tpu.assume_multiple %13, 8 : i32
    %15 = arith.index_cast %14 : i32 to index
    %c0_4 = arith.constant 0 : index
    %16 = vector.load %arg2[%15, %c0_4] : memref<16x128xf32, #tpu.memory_space<vmem>>, vector<8x128xf32>
    %17 = arith.index_cast %14 : i32 to index
    %c0_5 = arith.constant 0 : index
    %18 = vector.load %arg3[%17, %c0_5] : memref<16x128xf32, #tpu.memory_space<vmem>>, vector<8x128xf32>
    %19 = arith.subf %16, %18 : vector<8x128xf32>
    %20 = arith.mulf %19, %19 : vector<8x128xf32>
    %21 = arith.addf %12, %20 : vector<8x128xf32>
    %c2_i32 = arith.constant 2 : i32
    %c0_6 = arith.constant 0 : index
    %c0_7 = arith.constant 0 : index
    %c0_8 = arith.constant 0 : index
    %22 = vector.load %arg4[%c0_6, %c0_7, %c0_8] : memref<1x8x128xf32, #tpu.memory_space<vmem>>, vector<1x8x128xf32>
    %23 = vector.shape_cast %22 : vector<1x8x128xf32> to vector<8x128xf32>
    %24 = arith.addf %23, %21 : vector<8x128xf32>
    %c0_9 = arith.constant 0 : index
    %c0_10 = arith.constant 0 : index
    %c0_11 = arith.constant 0 : index
    %25 = vector.load %arg4[%c0_9, %c0_10, %c0_11] : memref<1x8x128xf32, #tpu.memory_space<vmem>>, vector<1x8x128xf32>
    %26 = vector.shape_cast %25 : vector<1x8x128xf32> to vector<8x128xf32>
    %27 = vector.shape_cast %24 : vector<8x128xf32> to vector<1x8x128xf32>
    tpu.vector_store %arg4[%c0_9, %c0_10, %c0_11], %27 {strides = array<i32>} : memref<1x8x128xf32, #tpu.memory_space<vmem>>, vector<1x8x128xf32>,
    return
  }
  func.func @transform_0(%arg0: i32, %arg1: i32) -> (i32, i32) {
    %c1_i32 = arith.constant 1 : i32
    %0 = arith.muli %arg0, %c1_i32 : i32
    %1 = arith.addi %0, %arg1 : i32
    %c0_i32 = arith.constant 0 : i32
    %2 = arith.minsi %1, %c0_i32 : i32
    %c0_i32_0 = arith.constant 0 : i32
    %c0_i32_1 = arith.constant 0 : i32
    return %2, %c0_i32_0 : i32, i32
  }
  func.func @transform_1(%arg0: i32, %arg1: i32) -> (i32, i32) {
    %c1_i32 = arith.constant 1 : i32
    %0 = arith.muli %arg0, %c1_i32 : i32
    %1 = arith.addi %0, %arg1 : i32
    %c0_i32 = arith.constant 0 : i32
    %2 = arith.minsi %1, %c0_i32 : i32
    %c0_i32_0 = arith.constant 0 : i32
    %c0_i32_1 = arith.constant 0 : i32
    return %2, %c0_i32_0 : i32, i32
  }
  func.func @transform_2(%arg0: i32, %arg1: i32) -> (i32, i32, i32) {
    %c0_i32 = arith.constant 0 : i32
    %c0_i32_0 = arith.constant 0 : i32
    %c0_i32_1 = arith.constant 0 : i32
    return %arg0, %c0_i32, %c0_i32_0 : i32, i32, i32
  }
}

</mosaic_0001>

<llo_original>
// kernel: tpu_custom_call.1
$region0: #{tpu_custom_call.1}
  #allocation0 [shape = 'u32[]', space=smem, size = 0x4, offset = 0x4, fixed_abs, tag = 'smem constant byte address 0x4 - core index']
  #allocation1 [shape = 'u32[144,128]{1,0:T(1,128)}', space=vmem, size = 0x12000, scoped, tag = 'internal scratch']
  %s0 = inlined_call_operand.hbm [shape: f32[16,128], index: 0, kind: input, shape index: {}]
  %s1 = inlined_call_operand.hbm [shape: f32[16,128], index: 1, kind: input, shape index: {}]
  %s2 = inlined_call_operand.hbm [shape: f32[1,8,128], index: 2, kind: output, shape index: {}]
  %s3 = sld [smem:[#allocation0]]
  $region30: #{tpu_custom_call.1} parent=0
    _
  %s5 = ssub.s32 1, %s3
  %s6 = scalar_select 0, %s5, %s3
  $region1: #{tpu_custom_call.1} parent=0
    #allocation2 [shape = 'u8[8192]{0}', space=vmem, size = 0x2000, scoped, tag = 'input window, operand 0, single buffered']
    #allocation3 [shape = 's32[1]{0}', space=sflag, size = 0x4, scoped, tag = 'scoped memory for tpu_custom_call.1']
    #allocation4 [shape = 's32[1]{0}', space=sflag, size = 0x4, scoped, tag = 'scoped memory for tpu_custom_call.1']
    #allocation5 [shape = 'u8[8192]{0}', space=vmem, size = 0x2000, scoped, tag = 'input window, operand 1, single buffered']
    #allocation6 [shape = 's32[1]{0}', space=sflag, size = 0x4, scoped, tag = 'scoped memory for tpu_custom_call.1']
    #allocation7 [shape = 'u8[4096]{0}', space=vmem, size = 0x1000, scoped, tag = 'output window, operand 0, single buffered']
    %7 = vsyncpa [#allocation3], 0
    %8 = vsyncpa [#allocation6], 0
    %9 = vsyncpa [#allocation4], 0
    // Predicated region
    $region2: #{tpu_custom_call.1} parent=1 // pred_check
      _
    $region3: #{tpu_custom_call.1} parent=1 // pred_check_branch
      %11 = sbr.rel (0) target = $region5
    $region4: #{tpu_custom_call.1} parent=1 // pred_region
      %s12 = sadd.s32 0, 0
      %p13 = scmp.lt.s32.totalorder %s12, 0
      %s14 = scalar_select %p13, %s12, 0
      %s15 = smul.u32 2, %s14
      %s17 = ssub.s32 256, 256
      %18 = vsyncadd [#allocation3], %s17
      %s19 = smul.addr %s15, 128
      %s20 = scalar_lea.hbm %s0, %s19
      %s21 = sshll.u32 [#allocation2], 4
      %s22 = int_to_ptr.vmem [resolvable:$true] %s21
      %27 = dma.hbm_to_vmem [thread:$0]  %s20, 256, %s22, [#allocation3], 128, 128, 8
    $region5: #{tpu_custom_call.1} parent=1 // pred_fallthru
      _
    // Predicated region
    $region6: #{tpu_custom_call.1} parent=1 // pred_check
      _
    $region7: #{tpu_custom_call.1} parent=1 // pred_check_branch
      %29 = sbr.rel (0) target = $region9
    $region8: #{tpu_custom_call.1} parent=1 // pred_region
      %s30 = sadd.s32 0, 0
      %p31 = scmp.lt.s32.totalorder %s30, 0
      %s32 = scalar_select %p31, %s30, 0
      %s33 = smul.u32 2, %s32
      %s35 = ssub.s32 256, 256
      %36 = vsyncadd [#allocation6], %s35
      %s37 = smul.addr %s33, 128
      %s38 = scalar_lea.hbm %s1, %s37
      %s39 = sshll.u32 [#allocation5], 4
      %s40 = int_to_ptr.vmem [resolvable:$true] %s39
      %45 = dma.hbm_to_vmem [thread:$0]  %s38, 256, %s40, [#allocation6], 128, 128, 8
    $region9: #{tpu_custom_call.1} parent=1 // pred_fallthru
      _
    // Predicated region
    $region10: #{tpu_custom_call.1} parent=1 // pred_check
      _
    $region11: #{tpu_custom_call.1} parent=1 // pred_check_branch
      %47 = sbr.rel (0) target = $region13
    $region12: #{tpu_custom_call.1} parent=1 // pred_region
      %48 = dma.done [#allocation3], 256
    $region13: #{tpu_custom_call.1} parent=1 // pred_fallthru
      _
    // Predicated region
    $region14: #{tpu_custom_call.1} parent=1 // pred_check
      _
    $region15: #{tpu_custom_call.1} parent=1 // pred_check_branch
      %50 = sbr.rel (0) target = $region17
    $region16: #{tpu_custom_call.1} parent=1 // pred_region
      %51 = dma.done [#allocation6], 256
    $region17: #{tpu_custom_call.1} parent=1 // pred_fallthru
      _
    %s52 = sadd.s32 0, 0
    %p53 = scmp.lt.s32.totalorder %s52, 0
    %s54 = scalar_select %p53, %s52, 0
    %s55 = smul.u32 2, %s54
    %s56 = sadd.s32 0, 0
    %p57 = scmp.lt.s32.totalorder %s56, 0
    %s58 = scalar_select %p57, %s56, 0
    %s59 = smul.u32 2, %s58
    %p60 = scmp.eq.s32.totalorder 0, 0
    // Predicated region
    $region18: #{tpu_custom_call.1} parent=1 // pred_check
      %p61 = pneg %p60
    $region19: #{tpu_custom_call.1} parent=1 // pred_check_branch
      %63 = sbr.rel (%p61) target = $region21
    $region20: #{tpu_custom_call.1} parent=1 // pred_region
      %64 = vst [vmem:[#allocation7] sm:$0xff] 0.0
    $region21: #{tpu_custom_call.1} parent=1 // pred_fallthru
      _
    %v65 = vld [vmem:[#allocation2] sm:$0xff]
    %v66 = vld [vmem:[#allocation5] sm:$0xff]
    %v67 = vsub.f32 %v65, %v66
    %v68 = vmul.f32 %v67, %v67
    %v69 = vadd.f32 %v68, 0.0
    %s70 = scalar_lea.vmem [#allocation2], 8
    %v71 = vld [vmem:[%s70] sm:$0xff]
    %s72 = scalar_lea.vmem [#allocation5], 8
    %v73 = vld [vmem:[%s72] sm:$0xff]
    %v74 = vsub.f32 %v71, %v73
    %v75 = vmul.f32 %v74, %v74
    %v76 = vadd.f32 %v69, %v75
    %v77 = vld [vmem:[#allocation7] sm:$0xff]
    %v78 = vadd.f32 %v77, %v76
    %79 = vst [vmem:[#allocation7] sm:$0xff] %v78
    // Predicated region
    $region22: #{tpu_custom_call.1} parent=1 // pred_check
      _
    $region23: #{tpu_custom_call.1} parent=1 // pred_check_branch
      %81 = sbr.rel (0) target = $region25
    $region24: #{tpu_custom_call.1} parent=1 // pred_region
      %s83 = ssub.s32 128, 128
      %84 = vsyncadd [#allocation4], %s83
      %s86 = sshll.u32 [#allocation7], 4
      %s87 = int_to_ptr.vmem [resolvable:$true] %s86
      %89 = dma.vmem_to_hbm [thread:$0]  %s87, 128, %s2, [#allocation4]
    $region25: #{tpu_custom_call.1} parent=1 // pred_fallthru
      _
    // Predicated region
    $region26: #{tpu_custom_call.1} parent=1 // pred_check
      _
    $region27: #{tpu_custom_call.1} parent=1 // pred_check_branch
      %91 = sbr.rel (0) target = $region29
    $region28: #{tpu_custom_call.1} parent=1 // pred_region
      %92 = dma.done [#allocation4], 128
    $region29: #{tpu_custom_call.1} parent=1 // pred_fallthru
      _
    %93 = vsyncpa [#allocation3], 1
    %94 = vsyncpa [#allocation6], 1
    %95 = vsyncpa [#allocation4], 1

</llo_original>
